<compile_context>
chip_gen: v7x
topology: tpu7x:2x2x1
jax: 0.10.0
libtpu: 0.0.40
codegen_flags: <defaults>
</compile_context>

<pallas_src>
import functools

import jax
import jax.numpy as jnp
from jax.experimental import pallas as pl
from jax.experimental.pallas import tpu as pltpu


def _dilated_attn_kernel(x_ref, o_ref, *, matmul_dtype):
    # x_ref / o_ref: (S_BLK, seg_dil, d_model) — S_BLK independent dilated
    # segments, self-attention within each segment.
    x = x_ref[...]
    d_model = x.shape[-1]
    xm = x.astype(matmul_dtype)   # bf16 MXU path when requested / bf16 inputs

    # QK^T: contract the shared last dim (no transpose / XLU traffic),
    # batched over the segment axis; accumulate in f32 on the MXU.
    s = jnp.einsum("sqd,skd->sqk", xm, xm, preferred_element_type=jnp.float32)
    s = s * (d_model ** -0.5)  # scale the small (q,k) scores, not the inputs

    # Numerically stable softmax along keys.  Exact normalization: the approx
    # EUP reciprocal's error blew the parity tolerance; the divide acts on a
    # (S_BLK, seg_dil, 1) tensor so it costs nothing.
    m = jnp.max(s, axis=-1, keepdims=True)
    p = jnp.exp(s - m)
    l = jnp.sum(p, axis=-1, keepdims=True)
    p = p * (1.0 / l)

    o = jnp.einsum("sqk,skd->sqd", p.astype(matmul_dtype), xm,
                   preferred_element_type=jnp.float32)
    o_ref[...] = o.astype(o_ref.dtype)


def _pick_segment_block(num_groups, seg_dil, d_model, itemsize,
                        target_bytes, min_bytes=512 << 10, vmem_budget=24 << 20):
    """Segments per grid step.

    * keeps the input block near `target_bytes` regardless of G's
      factorization (pl.cdiv grid; ragged final block is safe),
    * caps s_blk against the full in-kernel footprint (double-buffered in/out
      blocks + f32 temporaries + the (seg_dil x seg_dil) score tensors), not
      just the BlockSpec buffers, so large seg_dil cannot blow v7x's VMEM,
    * prefers >= 4 grid steps (2 per TensorCore on dual-TC parts) but only
      when that keeps blocks >= min_bytes; small problems on 1-TC parts run
      as one big block (no pointless splitting).
    """
    blk_bytes = seg_dil * d_model * itemsize               # one segment (in or out)
    per_seg = (4 * blk_bytes                                # 2x in + 2x out buffers
               + 3 * seg_dil * d_model * 4                  # f32 temps (xm, o, ...)
               + 2 * seg_dil * seg_dil * 4)                  # score tensors s, p
    cap_vmem = max(1, vmem_budget // per_seg)
    s_blk = min(num_groups, max(1, target_bytes // max(1, blk_bytes)), cap_vmem)
    s_blk = max(1, int(s_blk))
    if s_blk >= num_groups:
        return num_groups
    quarter = pl.cdiv(num_groups, 4)
    if quarter * blk_bytes >= min_bytes:
        s_blk = min(s_blk, int(quarter))
    return int(s_blk)


@functools.partial(
    jax.jit,
    static_argnames=("segment_size", "dilation_rate", "use_bf16_matmul",
                     "target_block_bytes"))
def dilated_attention_old(x, head_offsets, *, segment_size, dilation_rate,
                          use_bf16_matmul=False, target_block_bytes=2 << 20):
    """JAX/Pallas equivalent of DilatedAttentionold.forward.

    x: (B, seq_len, d_model). head_offsets: (num_heads, d_model), unused in forward.
    """
    del head_offsets  # initialized in the PyTorch module but never used in forward
    B, seq_len, d_model = x.shape
    assert seq_len % segment_size == 0
    num_segments = seq_len // segment_size
    seg_dil = -(-segment_size // dilation_rate)  # ceil, matches ::dilation_rate
    G = B * num_segments
    itemsize = jnp.dtype(x.dtype).itemsize
    matmul_dtype = (jnp.bfloat16
                    if (use_bf16_matmul or x.dtype == jnp.bfloat16)
                    else x.dtype)
    scale = d_model ** -0.5

    fused = (d_model % 128 == 0) and (segment_size % dilation_rate == 0)
    if not fused:
        # Lane-unaligned / tiny shapes (e.g. d_model=64, seg_dil=3) waste most
        # of every (8,128) vreg inside a Pallas kernel; plain XLA is as fast or
        # faster here and avoids the extra HBM pass through a materialized
        # dilated copy feeding a separate kernel.
        # TODO(synk): in-kernel strided-row gather for the d_model%128==0,
        # segment_size%dilation_rate!=0 corner if it ever shows up in practice.
        x_seg = x.reshape(B, num_segments, segment_size, d_model)
        xm = x_seg[:, :, ::dilation_rate, :].astype(matmul_dtype)
        s = jnp.einsum("bsqd,bskd->bsqk", xm, xm,
                       preferred_element_type=jnp.float32) * scale
        p = jax.nn.softmax(s, axis=-1)
        o = jnp.einsum("bsqk,bskd->bsqd", p.astype(matmul_dtype), xm,
                       preferred_element_type=jnp.float32)
        return o.astype(x.dtype).reshape(B, num_segments * seg_dil, d_model)

    # Fused-DMA dilation: free, layout-preserving reshape groups each segment's
    # rows in packs of `dilation_rate`; the first d_model lanes of each packed
    # row are exactly the ::dilation_rate (phase-0) row, so the input
    # BlockSpec's DMA performs the gather and undilated data never leaves HBM.
    x_in = x.reshape(G, seg_dil, dilation_rate * d_model)

    s_blk = _pick_segment_block(G, seg_dil, d_model, itemsize, target_block_bytes)
    grid = (pl.cdiv(G, s_blk),)  # ragged final block OK: segments are
                                 # independent and OOB output writes are masked

    kernel = functools.partial(_dilated_attn_kernel, matmul_dtype=matmul_dtype)
    cost = pl.CostEstimate(
        flops=4 * G * seg_dil * seg_dil * d_model,           # two matmuls
        transcendentals=G * seg_dil * seg_dil,               # exp
        bytes_accessed=2 * G * seg_dil * d_model * itemsize, # read dilated + write out
    )

    out = pl.pallas_call(
        kernel,
        out_shape=jax.ShapeDtypeStruct((G, seg_dil, d_model), x.dtype),
        grid_spec=pltpu.PrefetchScalarGridSpec(
            num_scalar_prefetch=0,
            grid=grid,
            in_specs=[pl.BlockSpec((s_blk, seg_dil, d_model), lambda g: (g, 0, 0))],
            out_specs=pl.BlockSpec((s_blk, seg_dil, d_model), lambda g: (g, 0, 0)),
        ),
        compiler_params=pltpu.CompilerParams(
            dimension_semantics=("parallel",),
            vmem_limit_bytes=32 * 1024 * 1024,
        ),
        cost_estimate=cost,
    )(x_in)

    # attn_output.reshape(batch_size, -1, d_model)
    return out.reshape(B, num_segments * seg_dil, d_model)


def _reference(x, segment_size, dilation_rate):
    """Pure-JAX (f32) reference of the PyTorch forward for tolerance checks."""
    B, seq_len, d_model = x.shape
    num_segments = seq_len // segment_size
    xf = x.astype(jnp.float32)
    x_seg = xf.reshape(B, num_segments, segment_size, d_model)
    x_dil = x_seg[:, :, ::dilation_rate, :]
    s = jnp.einsum("bsqd,bskd->bsqk", x_dil, x_dil) * (d_model ** -0.5)
    p = jax.nn.softmax(s, axis=-1)
    o = jnp.einsum("bsqk,bskd->bsqd", p, x_dil)
    return o.reshape(B, -1, d_model)


if __name__ == "__main__":
    key = jax.random.PRNGKey(0)

    # (batch, seq_len, d_model, heads, segment, dilation, dtype, bf16_matmul,
    #  target_block_bytes, tolerance)
    configs = [
        # lane-aligned -> dilation fused into the input DMA, f32 parity path
        (2, 32, 128, 8, 16, 2, jnp.float32, False, 2 << 20, 2e-3),
        (2, 512, 128, 8, 64, 2, jnp.float32, False, 2 << 20, 2e-3),
        # small target block -> multi-step grid with a ragged final block
        # (G=24, s_blk=5, 5 grid steps) to exercise the cdiv-based picker
        (3, 256, 128, 8, 32, 2, jnp.float32, False, 40 << 10, 2e-3),
        # bf16 matmuls on the MXU with f32 in/out (perf-review item); looser tol
        (2, 512, 128, 8, 64, 2, jnp.float32, True, 2 << 20, 5e-2),
        # bf16 end-to-end (bf16 DMA, bf16 MXU, bf16 store)
        (2, 256, 128, 8, 32, 4, jnp.bfloat16, False, 2 << 20, 1e-1),
        # lane-unaligned / ragged-dilation shape -> plain-XLA fallback path
        (2, 24, 64, 4, 8, 3, jnp.float32, False, 2 << 20, 2e-3),
    ]
    for cfg in configs:
        B, L, D, H, seg, dil, dtype, bf16_mm, tgt, tol = cfg
        kx, kh, key = jax.random.split(key, 3)
        x = jax.random.normal(kx, (B, L, D), dtype=jnp.float32).astype(dtype)
        # torch.randn(num_heads, d_model) analog; unused in forward.
        head_offsets = jax.random.normal(kh, (H, D), dtype=jnp.float32)

        out = dilated_attention_old(
            x, head_offsets, segment_size=seg, dilation_rate=dil,
            use_bf16_matmul=bf16_mm, target_block_bytes=tgt)
        out = jax.block_until_ready(out)

        ref = _reference(x, seg, dil)
        seg_dil = -(-seg // dil)
        assert out.shape == ref.shape == (B, (L // seg) * seg_dil, D), (cfg, out.shape)
        err = float(jnp.max(jnp.abs(out.astype(jnp.float32) - ref)))
        assert err < tol, (cfg, err)

    print("KERNEL_OK")
</pallas_src>

<mosaic_0001>
module attributes {stable_mosaic.version = 11 : i64} {
  func.func @_dilated_attn_kernel(%arg0: i32, %arg1: memref<4x8x128xf32, #tpu.memory_space<vmem>>, %arg2: memref<4x8x128xf32, #tpu.memory_space<vmem>>) attributes {dimension_semantics = [#tpu.dimension_semantics<parallel>], iteration_bounds = array<i64: 1>, scalar_prefetch = 0 : i64, scratch_operands = 0 : i64, tpu.core_type = #tpu.core_type<tc>, window_params = [{transform_indices = @transform_0, window_bounds = array<i64: 4, 8, 128>}, {transform_indices = @transform_1, window_bounds = array<i64: 4, 8, 128>}]} {
    %c0 = arith.constant 0 : index
    %c0_0 = arith.constant 0 : index
    %c0_1 = arith.constant 0 : index
    %0 = vector.load %arg1[%c0, %c0_0, %c0_1] : memref<4x8x128xf32, #tpu.memory_space<vmem>>, vector<4x8x128xf32>
    "tpu.trace_start"() <{level = 10 : i32, message = "sqd,skd->sqk"}> : () -> ()
    %cst = arith.constant dense<0.000000e+00> : vector<4x8x8xf32>
    %1 = tpu.matmul %0, %0, %cst {dimension_numbers = #tpu.dot_dimension_numbers<[2], [2], [1], [1], [0, 0, 0, 1, 1, 1], [0], [0]>} : vector<4x8x128xf32>, vector<4x8x128xf32>, vector<4x8x8xf32> -> vector<4x8x8xf32>
    "tpu.trace_stop"() : () -> ()
    %cst_2 = arith.constant 0.0883883461 : f32
    %2 = vector.broadcast %cst_2 : f32 to vector<4x8x8xf32>
    %3 = arith.mulf %1, %2 : vector<4x8x8xf32>
    %cst_3 = arith.constant dense<0xFF800000> : vector<4x8xf32>
    %4 = vector.multi_reduction <maximumf>, %3, %cst_3 [2] : vector<4x8x8xf32> to vector<4x8xf32>
    %5 = vector.shape_cast %4 : vector<4x8xf32> to vector<4x8x1xf32>
    %6 = vector.broadcast %5 : vector<4x8x1xf32> to vector<4x8x8xf32>
    %7 = arith.subf %3, %6 : vector<4x8x8xf32>
    %8 = math.exp %7 : vector<4x8x8xf32>
    %cst_4 = arith.constant dense<0.000000e+00> : vector<4x8xf32>
    %9 = vector.multi_reduction <add>, %8, %cst_4 [2] : vector<4x8x8xf32> to vector<4x8xf32>
    %10 = vector.shape_cast %9 : vector<4x8xf32> to vector<4x8x1xf32>
    %cst_5 = arith.constant 1.000000e+00 : f32
    %11 = vector.broadcast %cst_5 : f32 to vector<4x8x1xf32>
    %12 = arith.divf %11, %10 : vector<4x8x1xf32>
    %13 = vector.broadcast %12 : vector<4x8x1xf32> to vector<4x8x8xf32>
    %14 = arith.mulf %8, %13 : vector<4x8x8xf32>
    "tpu.trace_start"() <{level = 10 : i32, message = "sqk,skd->sqd"}> : () -> ()
    %cst_6 = arith.constant dense<0.000000e+00> : vector<4x8x128xf32>
    %15 = tpu.matmul %14, %0, %cst_6 {dimension_numbers = #tpu.dot_dimension_numbers<[2], [1], [1], [2], [0, 0, 0, 1, 1, 2], [0], [0]>} : vector<4x8x8xf32>, vector<4x8x128xf32>, vector<4x8x128xf32> -> vector<4x8x128xf32>
    "tpu.trace_stop"() : () -> ()
    %c0_7 = arith.constant 0 : index
    %c0_8 = arith.constant 0 : index
    %c0_9 = arith.constant 0 : index
    %16 = vector.load %arg2[%c0_7, %c0_8, %c0_9] : memref<4x8x128xf32, #tpu.memory_space<vmem>>, vector<4x8x128xf32>
    tpu.vector_store %arg2[%c0_7, %c0_8, %c0_9], %15 {strides = array<i32>} : memref<4x8x128xf32, #tpu.memory_space<vmem>>, vector<4x8x128xf32>,
    return
  }
  func.func @transform_0(%arg0: i32) -> (i32, i32, i32) {
    %c0_i32 = arith.constant 0 : i32
    %c0_i32_0 = arith.constant 0 : i32
    %c0_i32_1 = arith.constant 0 : i32
    return %arg0, %c0_i32, %c0_i32_0 : i32, i32, i32
  }
  func.func @transform_1(%arg0: i32) -> (i32, i32, i32) {
    %c0_i32 = arith.constant 0 : i32
    %c0_i32_0 = arith.constant 0 : i32
    %c0_i32_1 = arith.constant 0 : i32
    return %arg0, %c0_i32, %c0_i32_0 : i32, i32, i32
  }
}

</mosaic_0001>

<llo_original>
// kernel: dilated_attention_old.1
$region0: #{dilated_attention_old.1}
  #allocation0 [shape = 'u32[]', space=smem, size = 0x4, offset = 0x4, fixed_abs, tag = 'smem constant byte address 0x4 - core index']
  #allocation1 [shape = 'u32[144,128]{1,0:T(1,128)}', space=vmem, size = 0x12000, scoped, tag = 'internal scratch']
  %s0 = inlined_call_operand.vmem [shape: f32[4,8,256], index: 0, kind: input, shape index: {}]
  %s1 = inlined_call_operand.hbm [shape: f32[4,8,128], index: 1, kind: output, shape index: {}]
  %s2 = sld [smem:[#allocation0]]
  $region52: #{dilated_attention_old.1} parent=0
    _
  %s4 = ssub.s32 1, %s2
  %s5 = scalar_select 0, %s4, %s2
  $region1: #{dilated_attention_old.1} parent=0
    #allocation2 [shape = 'u8[16384]{0}', space=vmem, size = 0x4000, scoped, tag = 'input window, operand 0, single buffered']
    #allocation3 [shape = 'u8[16384]{0}', space=vmem, size = 0x4000, scoped, tag = 'output window, operand 0, single buffered']
    #allocation4 [shape = 's32[1]{0}', space=sflag, size = 0x4, scoped, tag = 'scoped memory for dilated_attention_old.1']
    %6 = vsyncpa [#allocation4], 0
    // Predicated region
    $region2: #{dilated_attention_old.1} parent=1 // pred_check
      _
    $region3: #{dilated_attention_old.1} parent=1 // pred_check_branch
      %8 = sbr.rel (0) target = $region5
    $region4: #{dilated_attention_old.1} parent=1 // pred_region
      // Predicated region
      $region6: #{dilated_attention_old.1} parent=4 // pred_check
        _
      $region7: #{dilated_attention_old.1} parent=4 // pred_check_branch
        %10 = sbr.rel (0) target = $region9
      $region8: #{dilated_attention_old.1} parent=4 // pred_region
        // Predicated region
        $region10: #{dilated_attention_old.1} parent=8 // pred_check
          _
        $region11: #{dilated_attention_old.1} parent=8 // pred_check_branch
          %12 = sbr.rel (0) target = $region13
        $region12: #{dilated_attention_old.1} parent=8 // pred_region
          // Predicated region
          $region25: #{dilated_attention_old.1} parent=12 // pred_check
            _
          $region26: #{dilated_attention_old.1} parent=12 // pred_check_branch
            %33 = sbr.rel (0) target = $region28
          $region27: #{dilated_attention_old.1} parent=12 // pred_region
            loop: start=0, step=1, limit=1
            $region29: #{dilated_attention_old.1} parent=27 // loop_pre_header
              _
            $region30: #{dilated_attention_old.1} parent=27 // loop_header
              %s35 = sphi 0, %s39
              %p36 = scmp.ge.s32.totalorder %s35, 1
              %s40 = sphi %s0, %s0
              %s41 = sphi [#allocation2], [#allocation2]
            $region31: #{dilated_attention_old.1} parent=27 // loop_header_branch
              %38 = sbr.rel (%p36) target = $region35
            $region32: #{dilated_attention_old.1} parent=27 // loop_body
              %v42 = vld [vmem:[%s40] sm:$0xff]
              %43 = vst [vmem:[%s41] sm:$0xff] %v42
              %v44 = vld [vmem:[%s40 + $0x10] sm:$0xff]
              %45 = vst [vmem:[%s41 + $0x8] sm:$0xff] %v44
              %v46 = vld [vmem:[%s40 + $0x20] sm:$0xff]
              %47 = vst [vmem:[%s41 + $0x10] sm:$0xff] %v46
              %v48 = vld [vmem:[%s40 + $0x30] sm:$0xff]
              %49 = vst [vmem:[%s41 + $0x18] sm:$0xff] %v48
            $region33: #{dilated_attention_old.1} parent=27 // loop_footer
              %s39 = sadd.s32 1, %s35
            $region34: #{dilated_attention_old.1} parent=27 // loop_footer_branch
              %34 = sbr.rel target = $region30
            $region35: #{dilated_attention_old.1} parent=27 // loop_exit
              _
          $region28: #{dilated_attention_old.1} parent=12 // pred_fallthru
            _
          // Predicated region
          $region36: #{dilated_attention_old.1} parent=12 // pred_check
            _
          $region37: #{dilated_attention_old.1} parent=12 // pred_check_branch
            %51 = sbr.rel target = $region39
          $region38: #{dilated_attention_old.1} parent=12 // pred_region
            _
          $region39: #{dilated_attention_old.1} parent=12 // pred_fallthru
            _
        $region13: #{dilated_attention_old.1} parent=8 // pred_fallthru
          _
        // Predicated region
        $region14: #{dilated_attention_old.1} parent=8 // pred_check
          _
        $region15: #{dilated_attention_old.1} parent=8 // pred_check_branch
          %14 = sbr.rel target = $region17
        $region16: #{dilated_attention_old.1} parent=8 // pred_region
          loop: start=0, step=1, limit=1
          $region18: #{dilated_attention_old.1} parent=16 // loop_pre_header
            _
          $region19: #{dilated_attention_old.1} parent=16 // loop_header
            %s17 = sphi 0, %s21
            %p18 = scmp.ge.s32.totalorder %s17, 1
            %s22 = sphi %s0, %s0
            %s23 = sphi [#allocation2], [#allocation2]
          $region20: #{dilated_attention_old.1} parent=16 // loop_header_branch
            %20 = sbr.rel (%p18) target = $region24
          $region21: #{dilated_attention_old.1} parent=16 // loop_body
            %v24 = vld [vmem:[%s22] sm:$0xff]
            %25 = vst [vmem:[%s23] sm:$0xff] %v24
            %v26 = vld [vmem:[%s22 + $0x10] sm:$0xff]
            %27 = vst [vmem:[%s23 + $0x8] sm:$0xff] %v26
            %v28 = vld [vmem:[%s22 + $0x20] sm:$0xff]
            %29 = vst [vmem:[%s23 + $0x10] sm:$0xff] %v28
            %v30 = vld [vmem:[%s22 + $0x30] sm:$0xff]
            %31 = vst [vmem:[%s23 + $0x18] sm:$0xff] %v30
          $region22: #{dilated_attention_old.1} parent=16 // loop_footer
            %s21 = sadd.s32 1, %s17
          $region23: #{dilated_attention_old.1} parent=16 // loop_footer_branch
            %16 = sbr.rel target = $region19
          $region24: #{dilated_attention_old.1} parent=16 // loop_exit
            _
        $region17: #{dilated_attention_old.1} parent=8 // pred_fallthru
          _
      $region9: #{dilated_attention_old.1} parent=4 // pred_fallthru
        _
      %52 = vnop
    $region5: #{dilated_attention_old.1} parent=1 // pred_fallthru
      _
    // Predicated region
    $region40: #{dilated_attention_old.1} parent=1 // pred_check
      _
    $region41: #{dilated_attention_old.1} parent=1 // pred_check_branch
      %54 = sbr.rel (0) target = $region43
    $region42: #{dilated_attention_old.1} parent=1 // pred_region
      _
    $region43: #{dilated_attention_old.1} parent=1 // pred_fallthru
      _
    %v55 = vld [vmem:[#allocation2] sm:$0xff]
    %v56 = vld [vmem:[#allocation2 + $0x8] sm:$0xff]
    %v57 = vld [vmem:[#allocation2 + $0x10] sm:$0xff]
    %v58 = vld [vmem:[#allocation2 + $0x18] sm:$0xff]
    %59 = vmatprep.subr.mxu0 0.0
    %60 = vmatpush1.xpose.msra.mxu0 %v55
    %61 = vmatprep.subr.mxu0 0.0
    %62 = vmatpush1.xpose.msra.mxu0 0.0
    %63 = vmatprep.subr.mxu0 0.0
    %64 = vmatpush1.xpose.msra.mxu0 0.0
    %65 = vmatprep.subr.mxu0 0.0
    %66 = vmatpush1.xpose.msra.mxu0 0.0
    %67 = vmatprep.subr.mxu0 0.0
    %68 = vmatpush1.xpose.msra.mxu0 0.0
    %69 = vmatprep.subr.mxu0 0.0
    %70 = vmatpush1.xpose.msra.mxu0 0.0
    %71 = vmatprep.subr.mxu0 0.0
    %72 = vmatpush1.xpose.msra.mxu0 0.0
    %73 = vmatprep.subr.mxu0 0.0
    %74 = vmatpush1.xpose.msra.mxu0 0.0
    %75 = vmatprep.subr.mxu0 0.0
    %76 = vmatpush1.xpose.msra.mxu0 0.0
    %77 = vmatprep.subr.mxu0 0.0
    %78 = vmatpush1.xpose.msra.mxu0 0.0
    %79 = vmatprep.subr.mxu0 0.0
    %80 = vmatpush1.xpose.msra.mxu0 0.0
    %81 = vmatprep.subr.mxu0 0.0
    %82 = vmatpush1.xpose.msra.mxu0 0.0
    %83 = vmatprep.subr.mxu0 0.0
    %84 = vmatpush1.xpose.msra.mxu0 0.0
    %85 = vmatprep.subr.mxu0 0.0
    %86 = vmatpush1.xpose.msra.mxu0 0.0
    %87 = vmatprep.subr.mxu0 0.0
    %88 = vmatpush1.xpose.msra.mxu0 0.0
    %89 = vmatprep.subr.mxu0 0.0
    %90 = vmatpush1.xpose.msra.mxu0 0.0
    %91 = vmatprep.subr.mxu0 0.0
    %92 = vmatpush1.xpose.msra.mxu0 0.0
    %93 = vmatprep.subr.mxu0 0.0
    %94 = vmatpush1.xpose.msra.mxu0 0.0
    %95 = vmatprep.subr.mxu0 0.0
    %96 = vmatpush1.xpose.msra.mxu0 0.0
    %97 = vmatprep.subr.mxu0 0.0
    %98 = vmatpush1.xpose.msra.mxu0 0.0
    %99 = vmatprep.subr.mxu0 0.0
    %100 = vmatpush1.xpose.msra.mxu0 0.0
    %101 = vmatprep.subr.mxu0 0.0
    %102 = vmatpush1.xpose.msra.mxu0 0.0
    %103 = vmatprep.subr.mxu0 0.0
    %104 = vmatpush1.xpose.msra.mxu0 0.0
    %105 = vmatprep.subr.mxu0 0.0
    %106 = vmatpush1.xpose.msra.mxu0 0.0
    %107 = vmatprep.subr.mxu0 0.0
    %108 = vmatpush1.xpose.msra.mxu0 0.0
    %109 = vmatprep.subr.mxu0 0.0
    %110 = vmatpush1.xpose.msra.mxu0 0.0
    %111 = vmatprep.subr.mxu0 0.0
    %112 = vmatpush1.xpose.msra.mxu0 0.0
    %113 = vmatprep.subr.mxu0 0.0
    %114 = vmatpush1.xpose.msra.mxu0 0.0
    %115 = vmatprep.subr.mxu0 0.0
    %116 = vmatpush1.xpose.msra.mxu0 0.0
    %117 = vmatprep.subr.mxu0 0.0
    %118 = vmatpush1.xpose.msra.mxu0 0.0
    %119 = vmatprep.subr.mxu0 0.0
    %120 = vmatpush1.xpose.msra.mxu0 0.0
    %121 = vmatprep.subr.mxu0 0.0
    %122 = vmatpush1.xpose.msra.mxu0 0.0
    %123 = vmatprep.mubr.f32.mxu0 0.0
    %124 = vmatmul.mubr.f32.gmra.mrb[0].mxu0 %v55
    %v125 = vpop.f32.mrb[0].mxu0
    %v126 = vadd.f32 0.0, %v125
    %v127 = vpop.f32.mrb[0].mxu0
    %128 = vdwg.mxu0
    %129 = vmatprep.subr.mxu0 0.0
    %130 = vmatpush1.xpose.msra.mxu0 %v56
    %131 = vmatprep.subr.mxu0 0.0
    %132 = vmatpush1.xpose.msra.mxu0 0.0
    %133 = vmatprep.subr.mxu0 0.0
    %134 = vmatpush1.xpose.msra.mxu0 0.0
    %135 = vmatprep.subr.mxu0 0.0
    %136 = vmatpush1.xpose.msra.mxu0 0.0
    %137 = vmatprep.subr.mxu0 0.0
    %138 = vmatpush1.xpose.msra.mxu0 0.0
    %139 = vmatprep.subr.mxu0 0.0
    %140 = vmatpush1.xpose.msra.mxu0 0.0
    %141 = vmatprep.subr.mxu0 0.0
    %142 = vmatpush1.xpose.msra.mxu0 0.0
    %143 = vmatprep.subr.mxu0 0.0
    %144 = vmatpush1.xpose.msra.mxu0 0.0
    %145 = vmatprep.subr.mxu0 0.0
    %146 = vmatpush1.xpose.msra.mxu0 0.0
    %147 = vmatprep.subr.mxu0 0.0
    %148 = vmatpush1.xpose.msra.mxu0 0.0
    %149 = vmatprep.subr.mxu0 0.0
    %150 = vmatpush1.xpose.msra.mxu0 0.0
    %151 = vmatprep.subr.mxu0 0.0
    %152 = vmatpush1.xpose.msra.mxu0 0.0
    %153 = vmatprep.subr.mxu0 0.0
    %154 = vmatpush1.xpose.msra.mxu0 0.0
    %155 = vmatprep.subr.mxu0 0.0
    %156 = vmatpush1.xpose.msra.mxu0 0.0
    %157 = vmatprep.subr.mxu0 0.0
    %158 = vmatpush1.xpose.msra.mxu0 0.0
    %159 = vmatprep.subr.mxu0 0.0
    %160 = vmatpush1.xpose.msra.mxu0 0.0
    %161 = vmatprep.subr.mxu0 0.0
    %162 = vmatpush1.xpose.msra.mxu0 0.0
    %163 = vmatprep.subr.mxu0 0.0
    %164 = vmatpush1.xpose.msra.mxu0 0.0
    %165 = vmatprep.subr.mxu0 0.0
    %166 = vmatpush1.xpose.msra.mxu0 0.0
    %167 = vmatprep.subr.mxu0 0.0
    %168 = vmatpush1.xpose.msra.mxu0 0.0
    %169 = vmatprep.subr.mxu0 0.0
    %170 = vmatpush1.xpose.msra.mxu0 0.0
    %171 = vmatprep.subr.mxu0 0.0
    %172 = vmatpush1.xpose.msra.mxu0 0.0
    %173 = vmatprep.subr.mxu0 0.0
    %174 = vmatpush1.xpose.msra.mxu0 0.0
    %175 = vmatprep.subr.mxu0 0.0
    %176 = vmatpush1.xpose.msra.mxu0 0.0
    %177 = vmatprep.subr.mxu0 0.0
    %178 = vmatpush1.xpose.msra.mxu0 0.0
    %179 = vmatprep.subr.mxu0 0.0
    %180 = vmatpush1.xpose.msra.mxu0 0.0
    %181 = vmatprep.subr.mxu0 0.0
    %182 = vmatpush1.xpose.msra.mxu0 0.0
    %183 = vmatprep.subr.mxu0 0.0
    %184 = vmatpush1.xpose.msra.mxu0 0.0
    %185 = vmatprep.subr.mxu0 0.0
    %186 = vmatpush1.xpose.msra.mxu0 0.0
    %187 = vmatprep.subr.mxu0 0.0
    %188 = vmatpush1.xpose.msra.mxu0 0.0
    %189 = vmatprep.subr.mxu0 0.0
    %190 = vmatpush1.xpose.msra.mxu0 0.0
    %191 = vmatprep.subr.mxu0 0.0
    %192 = vmatpush1.xpose.msra.mxu0 0.0
    %193 = vmatprep.mubr.f32.mxu0 0.0
    %194 = vmatmul.mubr.f32.gmra.mrb[0].mxu0 %v56
    %v195 = vpop.f32.mrb[0].mxu0
    %v196 = vadd.f32 0.0, %v195
    %v197 = vpop.f32.mrb[0].mxu0
    %198 = vdwg.mxu0
    %199 = vmatprep.subr.mxu0 0.0
    %200 = vmatpush1.xpose.msra.mxu0 %v57
    %201 = vmatprep.subr.mxu0 0.0
    %202 = vmatpush1.xpose.msra.mxu0 0.0
    %203 = vmatprep.subr.mxu0 0.0
    %204 = vmatpush1.xpose.msra.mxu0 0.0
    %205 = vmatprep.subr.mxu0 0.0
    %206 = vmatpush1.xpose.msra.mxu0 0.0
    %207 = vmatprep.subr.mxu0 0.0
    %208 = vmatpush1.xpose.msra.mxu0 0.0
    %209 = vmatprep.subr.mxu0 0.0
    %210 = vmatpush1.xpose.msra.mxu0 0.0
    %211 = vmatprep.subr.mxu0 0.0
    %212 = vmatpush1.xpose.msra.mxu0 0.0
    %213 = vmatprep.subr.mxu0 0.0
    %214 = vmatpush1.xpose.msra.mxu0 0.0
    %215 = vmatprep.subr.mxu0 0.0
    %216 = vmatpush1.xpose.msra.mxu0 0.0
    %217 = vmatprep.subr.mxu0 0.0
    %218 = vmatpush1.xpose.msra.mxu0 0.0
    %219 = vmatprep.subr.mxu0 0.0
    %220 = vmatpush1.xpose.msra.mxu0 0.0
    %221 = vmatprep.subr.mxu0 0.0
    %222 = vmatpush1.xpose.msra.mxu0 0.0
    %223 = vmatprep.subr.mxu0 0.0
    %224 = vmatpush1.xpose.msra.mxu0 0.0
    %225 = vmatprep.subr.mxu0 0.0
    %226 = vmatpush1.xpose.msra.mxu0 0.0
    %227 = vmatprep.subr.mxu0 0.0
    %228 = vmatpush1.xpose.msra.mxu0 0.0
    %229 = vmatprep.subr.mxu0 0.0
    %230 = vmatpush1.xpose.msra.mxu0 0.0
    %231 = vmatprep.subr.mxu0 0.0
    %232 = vmatpush1.xpose.msra.mxu0 0.0
    %233 = vmatprep.subr.mxu0 0.0
    %234 = vmatpush1.xpose.msra.mxu0 0.0
    %235 = vmatprep.subr.mxu0 0.0
    %236 = vmatpush1.xpose.msra.mxu0 0.0
    %237 = vmatprep.subr.mxu0 0.0
    %238 = vmatpush1.xpose.msra.mxu0 0.0
    %239 = vmatprep.subr.mxu0 0.0
    %240 = vmatpush1.xpose.msra.mxu0 0.0
    %241 = vmatprep.subr.mxu0 0.0
    %242 = vmatpush1.xpose.msra.mxu0 0.0
    %243 = vmatprep.subr.mxu0 0.0
    %244 = vmatpush1.xpose.msra.mxu0 0.0
    %245 = vmatprep.subr.mxu0 0.0
    %246 = vmatpush1.xpose.msra.mxu0 0.0
    %247 = vmatprep.subr.mxu0 0.0
    %248 = vmatpush1.xpose.msra.mxu0 0.0
    %249 = vmatprep.subr.mxu0 0.0
    %250 = vmatpush1.xpose.msra.mxu0 0.0
    %251 = vmatprep.subr.mxu0 0.0
    %252 = vmatpush1.xpose.msra.mxu0 0.0
    %253 = vmatprep.subr.mxu0 0.0
    %254 = vmatpush1.xpose.msra.mxu0 0.0
    %255 = vmatprep.subr.mxu0 0.0
    %256 = vmatpush1.xpose.msra.mxu0 0.0
    %257 = vmatprep.subr.mxu0 0.0
    %258 = vmatpush1.xpose.msra.mxu0 0.0
    %259 = vmatprep.subr.mxu0 0.0
    %260 = vmatpush1.xpose.msra.mxu0 0.0
    %261 = vmatprep.subr.mxu0 0.0
    %262 = vmatpush1.xpose.msra.mxu0 0.0
    %263 = vmatprep.mubr.f32.mxu0 0.0
    %264 = vmatmul.mubr.f32.gmra.mrb[0].mxu0 %v57
    %v265 = vpop.f32.mrb[0].mxu0
    %v266 = vadd.f32 0.0, %v265
    %v267 = vpop.f32.mrb[0].mxu0
    %268 = vdwg.mxu0
    %269 = vmatprep.subr.mxu0 0.0
    %270 = vmatpush1.xpose.msra.mxu0 %v58
    %271 = vmatprep.subr.mxu0 0.0
    %272 = vmatpush1.xpose.msra.mxu0 0.0
    %273 = vmatprep.subr.mxu0 0.0
    %274 = vmatpush1.xpose.msra.mxu0 0.0
    %275 = vmatprep.subr.mxu0 0.0
    %276 = vmatpush1.xpose.msra.mxu0 0.0
    %277 = vmatprep.subr.mxu0 0.0
    %278 = vmatpush1.xpose.msra.mxu0 0.0
    %279 = vmatprep.subr.mxu0 0.0
    %280 = vmatpush1.xpose.msra.mxu0 0.0
    %281 = vmatprep.subr.mxu0 0.0
    %282 = vmatpush1.xpose.msra.mxu0 0.0
    %283 = vmatprep.subr.mxu0 0.0
    %284 = vmatpush1.xpose.msra.mxu0 0.0
    %285 = vmatprep.subr.mxu0 0.0
    %286 = vmatpush1.xpose.msra.mxu0 0.0
    %287 = vmatprep.subr.mxu0 0.0
    %288 = vmatpush1.xpose.msra.mxu0 0.0
    %289 = vmatprep.subr.mxu0 0.0
    %290 = vmatpush1.xpose.msra.mxu0 0.0
    %291 = vmatprep.subr.mxu0 0.0
    %292 = vmatpush1.xpose.msra.mxu0 0.0
    %293 = vmatprep.subr.mxu0 0.0
    %294 = vmatpush1.xpose.msra.mxu0 0.0
    %295 = vmatprep.subr.mxu0 0.0
    %296 = vmatpush1.xpose.msra.mxu0 0.0
    %297 = vmatprep.subr.mxu0 0.0
    %298 = vmatpush1.xpose.msra.mxu0 0.0
    %299 = vmatprep.subr.mxu0 0.0
    %300 = vmatpush1.xpose.msra.mxu0 0.0
    %301 = vmatprep.subr.mxu0 0.0
    %302 = vmatpush1.xpose.msra.mxu0 0.0
    %303 = vmatprep.subr.mxu0 0.0
    %304 = vmatpush1.xpose.msra.mxu0 0.0
    %305 = vmatprep.subr.mxu0 0.0
    %306 = vmatpush1.xpose.msra.mxu0 0.0
    %307 = vmatprep.subr.mxu0 0.0
    %308 = vmatpush1.xpose.msra.mxu0 0.0
    %309 = vmatprep.subr.mxu0 0.0
    %310 = vmatpush1.xpose.msra.mxu0 0.0
    %311 = vmatprep.subr.mxu0 0.0
    %312 = vmatpush1.xpose.msra.mxu0 0.0
    %313 = vmatprep.subr.mxu0 0.0
    %314 = vmatpush1.xpose.msra.mxu0 0.0
    %315 = vmatprep.subr.mxu0 0.0
    %316 = vmatpush1.xpose.msra.mxu0 0.0
    %317 = vmatprep.subr.mxu0 0.0
    %318 = vmatpush1.xpose.msra.mxu0 0.0
    %319 = vmatprep.subr.mxu0 0.0
    %320 = vmatpush1.xpose.msra.mxu0 0.0
    %321 = vmatprep.subr.mxu0 0.0
    %322 = vmatpush1.xpose.msra.mxu0 0.0
    %323 = vmatprep.subr.mxu0 0.0
    %324 = vmatpush1.xpose.msra.mxu0 0.0
    %325 = vmatprep.subr.mxu0 0.0
    %326 = vmatpush1.xpose.msra.mxu0 0.0
    %327 = vmatprep.subr.mxu0 0.0
    %328 = vmatpush1.xpose.msra.mxu0 0.0
    %329 = vmatprep.subr.mxu0 0.0
    %330 = vmatpush1.xpose.msra.mxu0 0.0
    %331 = vmatprep.subr.mxu0 0.0
    %332 = vmatpush1.xpose.msra.mxu0 0.0
    %333 = vmatprep.mubr.f32.mxu0 0.0
    %334 = vmatmul.mubr.f32.gmra.mrb[0].mxu0 %v58
    %v335 = vpop.f32.mrb[0].mxu0
    %v336 = vadd.f32 0.0, %v335
    %v337 = vpop.f32.mrb[0].mxu0
    %338 = vdwg.mxu0
    %v339 = vmul.f32 %v126, 0.088388346
    %v340 = vmul.f32 %v196, 0.088388346
    %v341 = vmul.f32 %v266, 0.088388346
    %v342 = vmul.f32 %v336, 0.088388346
    %vm343 = vcmask 64512
    %v344 = vsel %vm343, %v339, -inf
    %345 = vmax.xlane.f32.xlu0 %v344
    %v346 = vpop.xlane.xlu0 %345
    %v347 = vsel %vm343, %v340, -inf
    %348 = vmax.xlane.f32.xlu0 %v347
    %v349 = vpop.xlane.xlu0 %348
    %v350 = vsel %vm343, %v341, -inf
    %351 = vmax.xlane.f32.xlu0 %v350
    %v352 = vpop.xlane.xlu0 %351
    %v353 = vsel %vm343, %v342, -inf
    %354 = vmax.xlane.f32.xlu0 %v353
    %v355 = vpop.xlane.xlu0 %354
    %v356 = vsub.f32 %v339, %v346
    %v357 = vsub.f32 %v340, %v349
    %v358 = vsub.f32 %v341, %v352
    %v359 = vsub.f32 %v342, %v355
    %v360 = vmul.f32 %v356, 1.442695
    %v361 = vpow.pop %v360
    %v362 = vmul.f32 %v357, 1.442695
    %v363 = vpow.pop %v362
    %v364 = vmul.f32 %v358, 1.442695
    %v365 = vpow.pop %v364
    %v366 = vmul.f32 %v359, 1.442695
    %v367 = vpow.pop %v366
    %v368 = vsel %vm343, %v361, 0.0
    %369 = vadd.xlane.f32.xlu0 %v368
    %v370 = vpop.xlane.xlu0 %369
    %v371 = vsel %vm343, %v363, 0.0
    %372 = vadd.xlane.f32.xlu0 %v371
    %v373 = vpop.xlane.xlu0 %372
    %v374 = vsel %vm343, %v365, 0.0
    %375 = vadd.xlane.f32.xlu0 %v374
    %v376 = vpop.xlane.xlu0 %375
    %v377 = vsel %vm343, %v367, 0.0
    %378 = vadd.xlane.f32.xlu0 %v377
    %v379 = vpop.xlane.xlu0 %378
    %v380 = vrcp.pop %v370
    %v381 = vmul.f32 1.0, %v380
    %v382 = vrcp.pop %v373
    %v383 = vmul.f32 1.0, %v382
    %v384 = vrcp.pop %v376
    %v385 = vmul.f32 1.0, %v384
    %v386 = vrcp.pop %v379
    %v387 = vmul.f32 1.0, %v386
    %v388 = vmul.f32 %v361, %v381
    %v389 = vmul.f32 %v363, %v383
    %v390 = vmul.f32 %v365, %v385
    %v391 = vmul.f32 %v367, %v387
    %v393 = vsel %vm343, %v388, 0
    %395 = vmatprep.subr.mxu0 0.0
    %396 = vmatpush1.msra.mxu0 %v55
    %397 = vmatprep.subr.mxu0 0.0
    %398 = vmatpush1.msra.mxu0 0.0
    %399 = vmatprep.subr.mxu0 0.0
    %400 = vmatpush1.msra.mxu0 0.0
    %401 = vmatprep.subr.mxu0 0.0
    %402 = vmatpush1.msra.mxu0 0.0
    %403 = vmatprep.subr.mxu0 0.0
    %404 = vmatpush1.msra.mxu0 0.0
    %405 = vmatprep.subr.mxu0 0.0
    %406 = vmatpush1.msra.mxu0 0.0
    %407 = vmatprep.subr.mxu0 0.0
    %408 = vmatpush1.msra.mxu0 0.0
    %409 = vmatprep.subr.mxu0 0.0
    %410 = vmatpush1.msra.mxu0 0.0
    %411 = vmatprep.subr.mxu0 0.0
    %412 = vmatpush1.msra.mxu0 0.0
    %413 = vmatprep.subr.mxu0 0.0
    %414 = vmatpush1.msra.mxu0 0.0
    %415 = vmatprep.subr.mxu0 0.0
    %416 = vmatpush1.msra.mxu0 0.0
    %417 = vmatprep.subr.mxu0 0.0
    %418 = vmatpush1.msra.mxu0 0.0
    %419 = vmatprep.subr.mxu0 0.0
    %420 = vmatpush1.msra.mxu0 0.0
    %421 = vmatprep.subr.mxu0 0.0
    %422 = vmatpush1.msra.mxu0 0.0
    %423 = vmatprep.subr.mxu0 0.0
    %424 = vmatpush1.msra.mxu0 0.0
    %425 = vmatprep.subr.mxu0 0.0
    %426 = vmatpush1.msra.mxu0 0.0
    %427 = vmatprep.subr.mxu0 0.0
    %428 = vmatpush1.msra.mxu0 0.0
    %429 = vmatprep.subr.mxu0 0.0
    %430 = vmatpush1.msra.mxu0 0.0
    %431 = vmatprep.subr.mxu0 0.0
    %432 = vmatpush1.msra.mxu0 0.0
    %433 = vmatprep.subr.mxu0 0.0
    %434 = vmatpush1.msra.mxu0 0.0
    %435 = vmatprep.subr.mxu0 0.0
    %436 = vmatpush1.msra.mxu0 0.0
    %437 = vmatprep.subr.mxu0 0.0
    %438 = vmatpush1.msra.mxu0 0.0
    %439 = vmatprep.subr.mxu0 0.0
    %440 = vmatpush1.msra.mxu0 0.0
    %441 = vmatprep.subr.mxu0 0.0
    %442 = vmatpush1.msra.mxu0 0.0
    %443 = vmatprep.subr.mxu0 0.0
    %444 = vmatpush1.msra.mxu0 0.0
    %445 = vmatprep.subr.mxu0 0.0
    %446 = vmatpush1.msra.mxu0 0.0
    %447 = vmatprep.subr.mxu0 0.0
    %448 = vmatpush1.msra.mxu0 0.0
    %449 = vmatprep.subr.mxu0 0.0
    %450 = vmatpush1.msra.mxu0 0.0
    %451 = vmatprep.subr.mxu0 0.0
    %452 = vmatpush1.msra.mxu0 0.0
    %453 = vmatprep.subr.mxu0 0.0
    %454 = vmatpush1.msra.mxu0 0.0
    %455 = vmatprep.subr.mxu0 0.0
    %456 = vmatpush1.msra.mxu0 0.0
    %457 = vmatprep.subr.mxu0 0.0
    %458 = vmatpush1.msra.mxu0 0.0
    %459 = vmatprep.mubr.f32.mxu0 0.0
    %460 = vmatmul.mubr.f32.gmra.mrb[0].mxu0 %v393
    %v461 = vpop.f32.mrb[0].mxu0
    %v462 = vadd.f32 0.0, %v461
    %v463 = vpop.f32.mrb[0].mxu0
    %464 = vdwg.mxu0
    %v466 = vsel %vm343, %v389, 0
    %468 = vmatprep.subr.mxu0 0.0
    %469 = vmatpush1.msra.mxu0 %v56
    %470 = vmatprep.subr.mxu0 0.0
    %471 = vmatpush1.msra.mxu0 0.0
    %472 = vmatprep.subr.mxu0 0.0
    %473 = vmatpush1.msra.mxu0 0.0
    %474 = vmatprep.subr.mxu0 0.0
    %475 = vmatpush1.msra.mxu0 0.0
    %476 = vmatprep.subr.mxu0 0.0
    %477 = vmatpush1.msra.mxu0 0.0
    %478 = vmatprep.subr.mxu0 0.0
    %479 = vmatpush1.msra.mxu0 0.0
    %480 = vmatprep.subr.mxu0 0.0
    %481 = vmatpush1.msra.mxu0 0.0
    %482 = vmatprep.subr.mxu0 0.0
    %483 = vmatpush1.msra.mxu0 0.0
    %484 = vmatprep.subr.mxu0 0.0
    %485 = vmatpush1.msra.mxu0 0.0
    %486 = vmatprep.subr.mxu0 0.0
    %487 = vmatpush1.msra.mxu0 0.0
    %488 = vmatprep.subr.mxu0 0.0
    %489 = vmatpush1.msra.mxu0 0.0
    %490 = vmatprep.subr.mxu0 0.0
    %491 = vmatpush1.msra.mxu0 0.0
    %492 = vmatprep.subr.mxu0 0.0
    %493 = vmatpush1.msra.mxu0 0.0
    %494 = vmatprep.subr.mxu0 0.0
    %495 = vmatpush1.msra.mxu0 0.0
    %496 = vmatprep.subr.mxu0 0.0
    %497 = vmatpush1.msra.mxu0 0.0
    %498 = vmatprep.subr.mxu0 0.0
    %499 = vmatpush1.msra.mxu0 0.0
    %500 = vmatprep.subr.mxu0 0.0
    %501 = vmatpush1.msra.mxu0 0.0
    %502 = vmatprep.subr.mxu0 0.0
    %503 = vmatpush1.msra.mxu0 0.0
    %504 = vmatprep.subr.mxu0 0.0
    %505 = vmatpush1.msra.mxu0 0.0
    %506 = vmatprep.subr.mxu0 0.0
    %507 = vmatpush1.msra.mxu0 0.0
    %508 = vmatprep.subr.mxu0 0.0
    %509 = vmatpush1.msra.mxu0 0.0
    %510 = vmatprep.subr.mxu0 0.0
    %511 = vmatpush1.msra.mxu0 0.0
    %512 = vmatprep.subr.mxu0 0.0
    %513 = vmatpush1.msra.mxu0 0.0
    %514 = vmatprep.subr.mxu0 0.0
    %515 = vmatpush1.msra.mxu0 0.0
    %516 = vmatprep.subr.mxu0 0.0
    %517 = vmatpush1.msra.mxu0 0.0
    %518 = vmatprep.subr.mxu0 0.0
    %519 = vmatpush1.msra.mxu0 0.0
    %520 = vmatprep.subr.mxu0 0.0
    %521 = vmatpush1.msra.mxu0 0.0
    %522 = vmatprep.subr.mxu0 0.0
    %523 = vmatpush1.msra.mxu0 0.0
    %524 = vmatprep.subr.mxu0 0.0
    %525 = vmatpush1.msra.mxu0 0.0
    %526 = vmatprep.subr.mxu0 0.0
    %527 = vmatpush1.msra.mxu0 0.0
    %528 = vmatprep.subr.mxu0 0.0
    %529 = vmatpush1.msra.mxu0 0.0
    %530 = vmatprep.subr.mxu0 0.0
    %531 = vmatpush1.msra.mxu0 0.0
    %532 = vmatprep.mubr.f32.mxu0 0.0
    %533 = vmatmul.mubr.f32.gmra.mrb[0].mxu0 %v466
    %v534 = vpop.f32.mrb[0].mxu0
    %v535 = vadd.f32 0.0, %v534
    %v536 = vpop.f32.mrb[0].mxu0
    %537 = vdwg.mxu0
    %v539 = vsel %vm343, %v390, 0
    %541 = vmatprep.subr.mxu0 0.0
    %542 = vmatpush1.msra.mxu0 %v57
    %543 = vmatprep.subr.mxu0 0.0
    %544 = vmatpush1.msra.mxu0 0.0
    %545 = vmatprep.subr.mxu0 0.0
    %546 = vmatpush1.msra.mxu0 0.0
    %547 = vmatprep.subr.mxu0 0.0
    %548 = vmatpush1.msra.mxu0 0.0
    %549 = vmatprep.subr.mxu0 0.0
    %550 = vmatpush1.msra.mxu0 0.0
    %551 = vmatprep.subr.mxu0 0.0
    %552 = vmatpush1.msra.mxu0 0.0
    %553 = vmatprep.subr.mxu0 0.0
    %554 = vmatpush1.msra.mxu0 0.0
    %555 = vmatprep.subr.mxu0 0.0
    %556 = vmatpush1.msra.mxu0 0.0
    %557 = vmatprep.subr.mxu0 0.0
    %558 = vmatpush1.msra.mxu0 0.0
    %559 = vmatprep.subr.mxu0 0.0
    %560 = vmatpush1.msra.mxu0 0.0
    %561 = vmatprep.subr.mxu0 0.0
    %562 = vmatpush1.msra.mxu0 0.0
    %563 = vmatprep.subr.mxu0 0.0
    %564 = vmatpush1.msra.mxu0 0.0
    %565 = vmatprep.subr.mxu0 0.0
    %566 = vmatpush1.msra.mxu0 0.0
    %567 = vmatprep.subr.mxu0 0.0
    %568 = vmatpush1.msra.mxu0 0.0
    %569 = vmatprep.subr.mxu0 0.0
    %570 = vmatpush1.msra.mxu0 0.0
    %571 = vmatprep.subr.mxu0 0.0
    %572 = vmatpush1.msra.mxu0 0.0
    %573 = vmatprep.subr.mxu0 0.0
    %574 = vmatpush1.msra.mxu0 0.0
    %575 = vmatprep.subr.mxu0 0.0
    %576 = vmatpush1.msra.mxu0 0.0
    %577 = vmatprep.subr.mxu0 0.0
    %578 = vmatpush1.msra.mxu0 0.0
    %579 = vmatprep.subr.mxu0 0.0
    %580 = vmatpush1.msra.mxu0 0.0
    %581 = vmatprep.subr.mxu0 0.0
    %582 = vmatpush1.msra.mxu0 0.0
    %583 = vmatprep.subr.mxu0 0.0
    %584 = vmatpush1.msra.mxu0 0.0
    %585 = vmatprep.subr.mxu0 0.0
    %586 = vmatpush1.msra.mxu0 0.0
    %587 = vmatprep.subr.mxu0 0.0
    %588 = vmatpush1.msra.mxu0 0.0
    %589 = vmatprep.subr.mxu0 0.0
    %590 = vmatpush1.msra.mxu0 0.0
    %591 = vmatprep.subr.mxu0 0.0
    %592 = vmatpush1.msra.mxu0 0.0
    %593 = vmatprep.subr.mxu0 0.0
    %594 = vmatpush1.msra.mxu0 0.0
    %595 = vmatprep.subr.mxu0 0.0
    %596 = vmatpush1.msra.mxu0 0.0
    %597 = vmatprep.subr.mxu0 0.0
    %598 = vmatpush1.msra.mxu0 0.0
    %599 = vmatprep.subr.mxu0 0.0
    %600 = vmatpush1.msra.mxu0 0.0
    %601 = vmatprep.subr.mxu0 0.0
    %602 = vmatpush1.msra.mxu0 0.0
    %603 = vmatprep.subr.mxu0 0.0
    %604 = vmatpush1.msra.mxu0 0.0
    %605 = vmatprep.mubr.f32.mxu0 0.0
    %606 = vmatmul.mubr.f32.gmra.mrb[0].mxu0 %v539
    %v607 = vpop.f32.mrb[0].mxu0
    %v608 = vadd.f32 0.0, %v607
    %v609 = vpop.f32.mrb[0].mxu0
    %610 = vdwg.mxu0
    %v612 = vsel %vm343, %v391, 0
    %614 = vmatprep.subr.mxu0 0.0
    %615 = vmatpush1.msra.mxu0 %v58
    %616 = vmatprep.subr.mxu0 0.0
    %617 = vmatpush1.msra.mxu0 0.0
    %618 = vmatprep.subr.mxu0 0.0
    %619 = vmatpush1.msra.mxu0 0.0
    %620 = vmatprep.subr.mxu0 0.0
    %621 = vmatpush1.msra.mxu0 0.0
    %622 = vmatprep.subr.mxu0 0.0
    %623 = vmatpush1.msra.mxu0 0.0
    %624 = vmatprep.subr.mxu0 0.0
    %625 = vmatpush1.msra.mxu0 0.0
    %626 = vmatprep.subr.mxu0 0.0
    %627 = vmatpush1.msra.mxu0 0.0
    %628 = vmatprep.subr.mxu0 0.0
    %629 = vmatpush1.msra.mxu0 0.0
    %630 = vmatprep.subr.mxu0 0.0
    %631 = vmatpush1.msra.mxu0 0.0
    %632 = vmatprep.subr.mxu0 0.0
    %633 = vmatpush1.msra.mxu0 0.0
    %634 = vmatprep.subr.mxu0 0.0
    %635 = vmatpush1.msra.mxu0 0.0
    %636 = vmatprep.subr.mxu0 0.0
    %637 = vmatpush1.msra.mxu0 0.0
    %638 = vmatprep.subr.mxu0 0.0
    %639 = vmatpush1.msra.mxu0 0.0
    %640 = vmatprep.subr.mxu0 0.0
    %641 = vmatpush1.msra.mxu0 0.0
    %642 = vmatprep.subr.mxu0 0.0
    %643 = vmatpush1.msra.mxu0 0.0
    %644 = vmatprep.subr.mxu0 0.0
    %645 = vmatpush1.msra.mxu0 0.0
    %646 = vmatprep.subr.mxu0 0.0
    %647 = vmatpush1.msra.mxu0 0.0
    %648 = vmatprep.subr.mxu0 0.0
    %649 = vmatpush1.msra.mxu0 0.0
    %650 = vmatprep.subr.mxu0 0.0
    %651 = vmatpush1.msra.mxu0 0.0
    %652 = vmatprep.subr.mxu0 0.0
    %653 = vmatpush1.msra.mxu0 0.0
    %654 = vmatprep.subr.mxu0 0.0
    %655 = vmatpush1.msra.mxu0 0.0
    %656 = vmatprep.subr.mxu0 0.0
    %657 = vmatpush1.msra.mxu0 0.0
    %658 = vmatprep.subr.mxu0 0.0
    %659 = vmatpush1.msra.mxu0 0.0
    %660 = vmatprep.subr.mxu0 0.0
    %661 = vmatpush1.msra.mxu0 0.0
    %662 = vmatprep.subr.mxu0 0.0
    %663 = vmatpush1.msra.mxu0 0.0
    %664 = vmatprep.subr.mxu0 0.0
    %665 = vmatpush1.msra.mxu0 0.0
    %666 = vmatprep.subr.mxu0 0.0
    %667 = vmatpush1.msra.mxu0 0.0
    %668 = vmatprep.subr.mxu0 0.0
    %669 = vmatpush1.msra.mxu0 0.0
    %670 = vmatprep.subr.mxu0 0.0
    %671 = vmatpush1.msra.mxu0 0.0
    %672 = vmatprep.subr.mxu0 0.0
    %673 = vmatpush1.msra.mxu0 0.0
    %674 = vmatprep.subr.mxu0 0.0
    %675 = vmatpush1.msra.mxu0 0.0
    %676 = vmatprep.subr.mxu0 0.0
    %677 = vmatpush1.msra.mxu0 0.0
    %678 = vmatprep.mubr.f32.mxu0 0.0
    %679 = vmatmul.mubr.f32.gmra.mrb[0].mxu0 %v612
    %v680 = vpop.f32.mrb[0].mxu0
    %v681 = vadd.f32 0.0, %v680
    %v682 = vpop.f32.mrb[0].mxu0
    %683 = vdwg.mxu0
    %684 = vst [vmem:[#allocation3] sm:$0xff] %v462
    %685 = vst [vmem:[#allocation3 + $0x8] sm:$0xff] %v535
    %686 = vst [vmem:[#allocation3 + $0x10] sm:$0xff] %v608
    %687 = vst [vmem:[#allocation3 + $0x18] sm:$0xff] %v681
    // Predicated region
    $region44: #{dilated_attention_old.1} parent=1 // pred_check
      _
    $region45: #{dilated_attention_old.1} parent=1 // pred_check_branch
      %689 = sbr.rel (0) target = $region47
    $region46: #{dilated_attention_old.1} parent=1 // pred_region
      %s691 = ssub.s32 512, 512
      %692 = vsyncadd [#allocation4], %s691
      %s693 = sshll.u32 [#allocation3], 4
      %s694 = int_to_ptr.vmem [resolvable:$true] %s693
      %699 = dma.vmem_to_hbm [thread:$0]  %s694, 512, %s1, [#allocation4], 128, 128, 8
    $region47: #{dilated_attention_old.1} parent=1 // pred_fallthru
      _
    // Predicated region
    $region48: #{dilated_attention_old.1} parent=1 // pred_check
      _
    $region49: #{dilated_attention_old.1} parent=1 // pred_check_branch
      %701 = sbr.rel (0) target = $region51
    $region50: #{dilated_attention_old.1} parent=1 // pred_region
      %702 = dma.done [#allocation4], 512
    $region51: #{dilated_attention_old.1} parent=1 // pred_fallthru
      _
    %703 = vsyncpa [#allocation4], 1

</llo_original>
